<compile_context>
chip_gen: v7x
topology: tpu7x:2x2x1
jax: 0.10.0
libtpu: 0.0.40
codegen_flags: <defaults>
</compile_context>

<pallas_src>
import functools

import jax
import jax.numpy as jnp
from jax.experimental import pallas as pl
from jax.experimental.pallas import tpu as pltpu


def fused_classifier_kernel(ids_ref, emb_ref, wih_ref, bf_ref, whh_ref,
                            br_ref, wlf_ref, wlr_ref, blin_ref, o_ref,
                            *, batch, seq, hidden, voc):
    """Single-invocation fused forward.

    ids_ref:  (S*B, 1)  int32  time-major flattened token ids
    emb_ref:  (VOC, E)  bf16   embedding table (resident)
    wih_ref:  (E, 8H)   bf16   [Wih_f^T | Wih_r^T] packed (fills 256 MXU lanes)
    bf_ref:   (1, 4H)   f32    forward bias (bias_ih + bias_hh)
    whh_ref:  (H, 4H)   bf16   forward recurrent weight
    br_ref:   (1, 4H)   f32    reverse bias (bias_ih + bias_hh)
    wlf_ref:  (H, L)    bf16   linear weight, forward half
    wlr_ref:  (H, L)    bf16   linear weight, reverse half
    blin_ref: (1, L)    f32    linear bias
    o_ref:    (B, L)    f32    logits
    """
    B, S, H, V = batch, seq, hidden, voc

    # 1) Embedding gather as a one-hot matmul (row t*B + b  ->  (t, b)).
    ids = ids_ref[...]                                            # (S*B, 1)
    iota = jax.lax.broadcasted_iota(jnp.int32, (S * B, V), 1)
    onehot = (ids == iota).astype(jnp.bfloat16)                   # (S*B, V)
    x = jnp.dot(onehot, emb_ref[...],
                preferred_element_type=jnp.float32)               # (S*B, E)

    # 2) Both directions' input projections in one batched MXU push.
    gx = jnp.dot(x.astype(jnp.bfloat16), wih_ref[...],
                 preferred_element_type=jnp.float32)              # (S*B, 8H)

    b_f = bf_ref[...]
    whh = whh_ref[...]
    h = jnp.zeros((B, H), jnp.float32)
    c = jnp.zeros((B, H), jnp.float32)

    # 3) Forward recurrence, fully unrolled over S (S is small and static).
    for t in range(S):
        gates = (gx[t * B:(t + 1) * B, 0:4 * H] + b_f
                 + jnp.dot(h.astype(jnp.bfloat16), whh,
                           preferred_element_type=jnp.float32))   # (B, 4H)
        # Full-vreg activations, then lane slices (PyTorch gate order i,f,g,o).
        sg = jax.nn.sigmoid(gates)
        th = jnp.tanh(gates)
        i_g = sg[:, 0 * H:1 * H]
        f_g = sg[:, 1 * H:2 * H]
        g_g = th[:, 2 * H:3 * H]
        o_g = sg[:, 3 * H:4 * H]
        c = f_g * c + i_g * g_g
        h = o_g * jnp.tanh(c)

    # 4) Reverse direction at output index S-1: one reverse step on x[S-1]
    #    from zero state (h0 == 0 -> no Whh_r term; c0 == 0 -> no forget term).
    gr = gx[(S - 1) * B:S * B, 4 * H:8 * H] + br_ref[...]         # (B, 4H)
    sg_r = jax.nn.sigmoid(gr)
    i_r = sg_r[:, 0 * H:1 * H]
    g_r = jnp.tanh(gr[:, 2 * H:3 * H])
    o_r = sg_r[:, 3 * H:4 * H]
    c_b = i_r * g_r
    h_b = o_r * jnp.tanh(c_b)

    # 5) Linear head: split matmuls (avoids lane-concat of the two halves).
    logits = (jnp.dot(h.astype(jnp.bfloat16), wlf_ref[...],
                      preferred_element_type=jnp.float32)
              + jnp.dot(h_b.astype(jnp.bfloat16), wlr_ref[...],
                        preferred_element_type=jnp.float32)
              + blin_ref[...])
    o_ref[...] = logits.astype(o_ref.dtype)


def init_params(key, voc_size, emb_size, hidden_size, label_count):
    """Deterministic synthetic parameters, pre-packed / pre-cast for the kernel.

    Mirrors the torch module: Embedding(voc,emb) ~ N(0,1); LSTM and Linear
    weights ~ U(-k, k).  Weights are stored transposed (x @ W^T layout), the
    forward/reverse input weights are packed side by side as (E, 8H), LSTM
    biases are pre-summed (bias_ih + bias_hh), and MXU operands are bf16.
    """
    ks = jax.random.split(key, 11)
    k_lstm = 1.0 / jnp.sqrt(hidden_size)
    k_lin = 1.0 / jnp.sqrt(2 * hidden_size)

    def u(k, shape, bound):
        return jax.random.uniform(k, shape, jnp.float32, -bound, bound)

    H = hidden_size
    emb = jax.random.normal(ks[0], (voc_size, emb_size), jnp.float32)
    wih_f = u(ks[1], (emb_size, 4 * H), k_lstm)          # Wih_f^T
    whh_f = u(ks[2], (H, 4 * H), k_lstm)                 # Whh_f^T
    b_f = u(ks[3], (1, 4 * H), k_lstm) + u(ks[4], (1, 4 * H), k_lstm)
    wih_r = u(ks[5], (emb_size, 4 * H), k_lstm)          # Wih_r^T
    # Whh_r exists in the torch module but only ever multiplies a zero state
    # at the position the head consumes, so it is never materialized/used.
    b_r = u(ks[7], (1, 4 * H), k_lstm) + u(ks[8], (1, 4 * H), k_lstm)
    wlin = u(ks[9], (2 * H, label_count), k_lin)         # W_lin^T
    blin = u(ks[10], (1, label_count), k_lin)

    return {
        "emb": emb.astype(jnp.bfloat16),                                   # (V, E)
        "wih_fr": jnp.concatenate([wih_f, wih_r], axis=1).astype(jnp.bfloat16),  # (E, 8H)
        "whh_f": whh_f.astype(jnp.bfloat16),                               # (H, 4H)
        "b_f": b_f,                                                        # (1, 4H) f32
        "b_r": b_r,                                                        # (1, 4H) f32
        "wlin_f": wlin[:H].astype(jnp.bfloat16),                           # (H, L)
        "wlin_r": wlin[H:].astype(jnp.bfloat16),                           # (H, L)
        "blin": blin,                                                      # (1, L) f32
    }


@jax.jit
def my_classifier_forward(input_ids, params):
    B, S = input_ids.shape
    V, E = params["emb"].shape
    H = params["b_f"].shape[-1] // 4
    L = params["blin"].shape[-1]

    # Only wrapper-side op: tiny int32 transpose/reshape to time-major flat
    # ids (row t*B + b), so the in-kernel gather produces time-major rows.
    ids_tm = input_ids.T.reshape(S * B, 1).astype(jnp.int32)

    kernel = functools.partial(fused_classifier_kernel,
                               batch=B, seq=S, hidden=H, voc=V)
    vmem_spec = pl.BlockSpec(memory_space=pltpu.MemorySpace.VMEM)
    return pl.pallas_call(
        kernel,
        out_shape=jax.ShapeDtypeStruct((B, L), jnp.float32),
        in_specs=[vmem_spec] * 9,          # whole arrays resident in VMEM
        out_specs=vmem_spec,
    )(ids_tm, params["emb"], params["wih_fr"], params["b_f"],
      params["whh_f"], params["b_r"], params["wlin_f"], params["wlin_r"],
      params["blin"])


if __name__ == "__main__":
    # Small shapes consistent with the module's forward.
    VOC, EMB, HID, LABELS = 50, 16, 32, 5
    BATCH, SEQ = 2, 8

    key = jax.random.PRNGKey(0)
    k_param, k_inp = jax.random.split(key)
    params = init_params(k_param, VOC, EMB, HID, LABELS)
    input_ids = jax.random.randint(k_inp, (BATCH, SEQ), 0, VOC, dtype=jnp.int32)

    out = my_classifier_forward(input_ids, params)
    out = jax.block_until_ready(out)
    assert out.shape == (BATCH, LABELS) and out.dtype == jnp.float32
    print("KERNEL_OK")
</pallas_src>

<mosaic_0001>
module attributes {stable_mosaic.version = 11 : i64} {
  func.func @fused_classifier_kernel(%arg0: memref<16x1xi32, #tpu.memory_space<vmem>>, %arg1: memref<50x16xbf16, #tpu.memory_space<vmem>>, %arg2: memref<16x256xbf16, #tpu.memory_space<vmem>>, %arg3: memref<1x128xf32, #tpu.memory_space<vmem>>, %arg4: memref<32x128xbf16, #tpu.memory_space<vmem>>, %arg5: memref<1x128xf32, #tpu.memory_space<vmem>>, %arg6: memref<32x5xbf16, #tpu.memory_space<vmem>>, %arg7: memref<32x5xbf16, #tpu.memory_space<vmem>>, %arg8: memref<1x5xf32, #tpu.memory_space<vmem>>, %arg9: memref<2x5xf32, #tpu.memory_space<vmem>>) attributes {dimension_semantics = [], scalar_prefetch = 0 : i64, scratch_operands = 0 : i64, tpu.core_type = #tpu.core_type<tc>} {
    %c0 = arith.constant 0 : index
    %c0_0 = arith.constant 0 : index
    %0 = vector.load %arg0[%c0, %c0_0] : memref<16x1xi32, #tpu.memory_space<vmem>>, vector<16x1xi32>
    %1 = tpu.iota {dimensions = array<i32: 1>} : vector<16x50xi32>
    %2 = vector.broadcast %0 : vector<16x1xi32> to vector<16x50xi32>
    %3 = arith.cmpi eq, %2, %1 : vector<16x50xi32>
    %4 = arith.extui %3 : vector<16x50xi1> to vector<16x50xi32>
    %5 = arith.sitofp %4 : vector<16x50xi32> to vector<16x50xf32>
    %6 = arith.truncf %5 : vector<16x50xf32> to vector<16x50xbf16>
    %c0_1 = arith.constant 0 : index
    %c0_2 = arith.constant 0 : index
    %7 = vector.load %arg1[%c0_1, %c0_2] : memref<50x16xbf16, #tpu.memory_space<vmem>>, vector<50x16xbf16>
    %cst = arith.constant dense<0.000000e+00> : vector<16x16xf32>
    %8 = tpu.matmul %6, %7, %cst {dimension_numbers = #tpu.dot_dimension_numbers<[1], [0], [0], [1], [0, 0, 1, 1], [], []>} : vector<16x50xbf16>, vector<50x16xbf16>, vector<16x16xf32> -> vector<16x16xf32>
    %9 = arith.truncf %8 : vector<16x16xf32> to vector<16x16xbf16>
    %c0_3 = arith.constant 0 : index
    %c0_4 = arith.constant 0 : index
    %10 = vector.load %arg2[%c0_3, %c0_4] : memref<16x256xbf16, #tpu.memory_space<vmem>>, vector<16x256xbf16>
    %cst_5 = arith.constant dense<0.000000e+00> : vector<16x256xf32>
    %11 = tpu.matmul %9, %10, %cst_5 {dimension_numbers = #tpu.dot_dimension_numbers<[1], [0], [0], [1], [0, 0, 1, 1], [], []>} : vector<16x16xbf16>, vector<16x256xbf16>, vector<16x256xf32> -> vector<16x256xf32>
    %c0_6 = arith.constant 0 : index
    %c0_7 = arith.constant 0 : index
    %12 = vector.load %arg3[%c0_6, %c0_7] : memref<1x128xf32, #tpu.memory_space<vmem>>, vector<1x128xf32>
    %c0_8 = arith.constant 0 : index
    %c0_9 = arith.constant 0 : index
    %13 = vector.load %arg4[%c0_8, %c0_9] : memref<32x128xbf16, #tpu.memory_space<vmem>>, vector<32x128xbf16>
    %cst_10 = arith.constant 0.000000e+00 : f32
    %14 = vector.broadcast %cst_10 : f32 to vector<2x32xf32>
    %cst_11 = arith.constant 0.000000e+00 : f32
    %15 = vector.broadcast %cst_11 : f32 to vector<2x32xf32>
    %16 = vector.extract_strided_slice %11 {offsets = [0, 0], sizes = [2, 128], strides = [1, 1]} : vector<16x256xf32> to vector<2x128xf32>
    %17 = vector.broadcast %12 : vector<1x128xf32> to vector<2x128xf32>
    %18 = arith.addf %16, %17 : vector<2x128xf32>
    %19 = arith.truncf %14 : vector<2x32xf32> to vector<2x32xbf16>
    %cst_12 = arith.constant dense<0.000000e+00> : vector<2x128xf32>
    %20 = tpu.matmul %19, %13, %cst_12 {dimension_numbers = #tpu.dot_dimension_numbers<[1], [0], [0], [1], [0, 0, 1, 1], [], []>} : vector<2x32xbf16>, vector<32x128xbf16>, vector<2x128xf32> -> vector<2x128xf32>
    %21 = arith.addf %18, %20 : vector<2x128xf32>
    %22 = arith.negf %21 : vector<2x128xf32>
    %23 = math.exp %22 : vector<2x128xf32>
    %cst_13 = arith.constant 1.000000e+00 : f32
    %24 = vector.broadcast %cst_13 : f32 to vector<2x128xf32>
    %25 = arith.addf %24, %23 : vector<2x128xf32>
    %26 = arith.divf %24, %25 : vector<2x128xf32>
    %27 = math.tanh %21 : vector<2x128xf32>
    %28 = vector.extract_strided_slice %26 {offsets = [0, 0], sizes = [2, 32], strides = [1, 1]} : vector<2x128xf32> to vector<2x32xf32>
    %29 = vector.extract_strided_slice %26 {offsets = [0, 32], sizes = [2, 32], strides = [1, 1]} : vector<2x128xf32> to vector<2x32xf32>
    %30 = vector.extract_strided_slice %27 {offsets = [0, 64], sizes = [2, 32], strides = [1, 1]} : vector<2x128xf32> to vector<2x32xf32>
    %31 = vector.extract_strided_slice %26 {offsets = [0, 96], sizes = [2, 32], strides = [1, 1]} : vector<2x128xf32> to vector<2x32xf32>
    %32 = arith.mulf %29, %15 : vector<2x32xf32>
    %33 = arith.mulf %28, %30 : vector<2x32xf32>
    %34 = arith.addf %32, %33 : vector<2x32xf32>
    %35 = math.tanh %34 : vector<2x32xf32>
    %36 = arith.mulf %31, %35 : vector<2x32xf32>
    %37 = vector.extract_strided_slice %11 {offsets = [2, 0], sizes = [2, 128], strides = [1, 1]} : vector<16x256xf32> to vector<2x128xf32>
    %38 = vector.broadcast %12 : vector<1x128xf32> to vector<2x128xf32>
    %39 = arith.addf %37, %38 : vector<2x128xf32>
    %40 = arith.truncf %36 : vector<2x32xf32> to vector<2x32xbf16>
    %cst_14 = arith.constant dense<0.000000e+00> : vector<2x128xf32>
    %41 = tpu.matmul %40, %13, %cst_14 {dimension_numbers = #tpu.dot_dimension_numbers<[1], [0], [0], [1], [0, 0, 1, 1], [], []>} : vector<2x32xbf16>, vector<32x128xbf16>, vector<2x128xf32> -> vector<2x128xf32>
    %42 = arith.addf %39, %41 : vector<2x128xf32>
    %43 = arith.negf %42 : vector<2x128xf32>
    %44 = math.exp %43 : vector<2x128xf32>
    %cst_15 = arith.constant 1.000000e+00 : f32
    %45 = vector.broadcast %cst_15 : f32 to vector<2x128xf32>
    %46 = arith.addf %45, %44 : vector<2x128xf32>
    %47 = arith.divf %45, %46 : vector<2x128xf32>
    %48 = math.tanh %42 : vector<2x128xf32>
    %49 = vector.extract_strided_slice %47 {offsets = [0, 0], sizes = [2, 32], strides = [1, 1]} : vector<2x128xf32> to vector<2x32xf32>
    %50 = vector.extract_strided_slice %47 {offsets = [0, 32], sizes = [2, 32], strides = [1, 1]} : vector<2x128xf32> to vector<2x32xf32>
    %51 = vector.extract_strided_slice %48 {offsets = [0, 64], sizes = [2, 32], strides = [1, 1]} : vector<2x128xf32> to vector<2x32xf32>
    %52 = vector.extract_strided_slice %47 {offsets = [0, 96], sizes = [2, 32], strides = [1, 1]} : vector<2x128xf32> to vector<2x32xf32>
    %53 = arith.mulf %50, %34 : vector<2x32xf32>
    %54 = arith.mulf %49, %51 : vector<2x32xf32>
    %55 = arith.addf %53, %54 : vector<2x32xf32>
    %56 = math.tanh %55 : vector<2x32xf32>
    %57 = arith.mulf %52, %56 : vector<2x32xf32>
    %58 = vector.extract_strided_slice %11 {offsets = [4, 0], sizes = [2, 128], strides = [1, 1]} : vector<16x256xf32> to vector<2x128xf32>
    %59 = vector.broadcast %12 : vector<1x128xf32> to vector<2x128xf32>
    %60 = arith.addf %58, %59 : vector<2x128xf32>
    %61 = arith.truncf %57 : vector<2x32xf32> to vector<2x32xbf16>
    %cst_16 = arith.constant dense<0.000000e+00> : vector<2x128xf32>
    %62 = tpu.matmul %61, %13, %cst_16 {dimension_numbers = #tpu.dot_dimension_numbers<[1], [0], [0], [1], [0, 0, 1, 1], [], []>} : vector<2x32xbf16>, vector<32x128xbf16>, vector<2x128xf32> -> vector<2x128xf32>
    %63 = arith.addf %60, %62 : vector<2x128xf32>
    %64 = arith.negf %63 : vector<2x128xf32>
    %65 = math.exp %64 : vector<2x128xf32>
    %cst_17 = arith.constant 1.000000e+00 : f32
    %66 = vector.broadcast %cst_17 : f32 to vector<2x128xf32>
    %67 = arith.addf %66, %65 : vector<2x128xf32>
    %68 = arith.divf %66, %67 : vector<2x128xf32>
    %69 = math.tanh %63 : vector<2x128xf32>
    %70 = vector.extract_strided_slice %68 {offsets = [0, 0], sizes = [2, 32], strides = [1, 1]} : vector<2x128xf32> to vector<2x32xf32>
    %71 = vector.extract_strided_slice %68 {offsets = [0, 32], sizes = [2, 32], strides = [1, 1]} : vector<2x128xf32> to vector<2x32xf32>
    %72 = vector.extract_strided_slice %69 {offsets = [0, 64], sizes = [2, 32], strides = [1, 1]} : vector<2x128xf32> to vector<2x32xf32>
    %73 = vector.extract_strided_slice %68 {offsets = [0, 96], sizes = [2, 32], strides = [1, 1]} : vector<2x128xf32> to vector<2x32xf32>
    %74 = arith.mulf %71, %55 : vector<2x32xf32>
    %75 = arith.mulf %70, %72 : vector<2x32xf32>
    %76 = arith.addf %74, %75 : vector<2x32xf32>
    %77 = math.tanh %76 : vector<2x32xf32>
    %78 = arith.mulf %73, %77 : vector<2x32xf32>
    %79 = vector.extract_strided_slice %11 {offsets = [6, 0], sizes = [2, 128], strides = [1, 1]} : vector<16x256xf32> to vector<2x128xf32>
    %80 = vector.broadcast %12 : vector<1x128xf32> to vector<2x128xf32>
    %81 = arith.addf %79, %80 : vector<2x128xf32>
    %82 = arith.truncf %78 : vector<2x32xf32> to vector<2x32xbf16>
    %cst_18 = arith.constant dense<0.000000e+00> : vector<2x128xf32>
    %83 = tpu.matmul %82, %13, %cst_18 {dimension_numbers = #tpu.dot_dimension_numbers<[1], [0], [0], [1], [0, 0, 1, 1], [], []>} : vector<2x32xbf16>, vector<32x128xbf16>, vector<2x128xf32> -> vector<2x128xf32>
    %84 = arith.addf %81, %83 : vector<2x128xf32>
    %85 = arith.negf %84 : vector<2x128xf32>
    %86 = math.exp %85 : vector<2x128xf32>
    %cst_19 = arith.constant 1.000000e+00 : f32
    %87 = vector.broadcast %cst_19 : f32 to vector<2x128xf32>
    %88 = arith.addf %87, %86 : vector<2x128xf32>
    %89 = arith.divf %87, %88 : vector<2x128xf32>
    %90 = math.tanh %84 : vector<2x128xf32>
    %91 = vector.extract_strided_slice %89 {offsets = [0, 0], sizes = [2, 32], strides = [1, 1]} : vector<2x128xf32> to vector<2x32xf32>
    %92 = vector.extract_strided_slice %89 {offsets = [0, 32], sizes = [2, 32], strides = [1, 1]} : vector<2x128xf32> to vector<2x32xf32>
    %93 = vector.extract_strided_slice %90 {offsets = [0, 64], sizes = [2, 32], strides = [1, 1]} : vector<2x128xf32> to vector<2x32xf32>
    %94 = vector.extract_strided_slice %89 {offsets = [0, 96], sizes = [2, 32], strides = [1, 1]} : vector<2x128xf32> to vector<2x32xf32>
    %95 = arith.mulf %92, %76 : vector<2x32xf32>
    %96 = arith.mulf %91, %93 : vector<2x32xf32>
    %97 = arith.addf %95, %96 : vector<2x32xf32>
    %98 = math.tanh %97 : vector<2x32xf32>
    %99 = arith.mulf %94, %98 : vector<2x32xf32>
    %100 = vector.extract_strided_slice %11 {offsets = [8, 0], sizes = [2, 128], strides = [1, 1]} : vector<16x256xf32> to vector<2x128xf32>
    %101 = vector.broadcast %12 : vector<1x128xf32> to vector<2x128xf32>
    %102 = arith.addf %100, %101 : vector<2x128xf32>
    %103 = arith.truncf %99 : vector<2x32xf32> to vector<2x32xbf16>
    %cst_20 = arith.constant dense<0.000000e+00> : vector<2x128xf32>
    %104 = tpu.matmul %103, %13, %cst_20 {dimension_numbers = #tpu.dot_dimension_numbers<[1], [0], [0], [1], [0, 0, 1, 1], [], []>} : vector<2x32xbf16>, vector<32x128xbf16>, vector<2x128xf32> -> vector<2x128xf32>
    %105 = arith.addf %102, %104 : vector<2x128xf32>
    %106 = arith.negf %105 : vector<2x128xf32>
    %107 = math.exp %106 : vector<2x128xf32>
    %cst_21 = arith.constant 1.000000e+00 : f32
    %108 = vector.broadcast %cst_21 : f32 to vector<2x128xf32>
    %109 = arith.addf %108, %107 : vector<2x128xf32>
    %110 = arith.divf %108, %109 : vector<2x128xf32>
    %111 = math.tanh %105 : vector<2x128xf32>
    %112 = vector.extract_strided_slice %110 {offsets = [0, 0], sizes = [2, 32], strides = [1, 1]} : vector<2x128xf32> to vector<2x32xf32>
    %113 = vector.extract_strided_slice %110 {offsets = [0, 32], sizes = [2, 32], strides = [1, 1]} : vector<2x128xf32> to vector<2x32xf32>
    %114 = vector.extract_strided_slice %111 {offsets = [0, 64], sizes = [2, 32], strides = [1, 1]} : vector<2x128xf32> to vector<2x32xf32>
    %115 = vector.extract_strided_slice %110 {offsets = [0, 96], sizes = [2, 32], strides = [1, 1]} : vector<2x128xf32> to vector<2x32xf32>
    %116 = arith.mulf %113, %97 : vector<2x32xf32>
    %117 = arith.mulf %112, %114 : vector<2x32xf32>
    %118 = arith.addf %116, %117 : vector<2x32xf32>
    %119 = math.tanh %118 : vector<2x32xf32>
    %120 = arith.mulf %115, %119 : vector<2x32xf32>
    %121 = vector.extract_strided_slice %11 {offsets = [10, 0], sizes = [2, 128], strides = [1, 1]} : vector<16x256xf32> to vector<2x128xf32>
    %122 = vector.broadcast %12 : vector<1x128xf32> to vector<2x128xf32>
    %123 = arith.addf %121, %122 : vector<2x128xf32>
    %124 = arith.truncf %120 : vector<2x32xf32> to vector<2x32xbf16>
    %cst_22 = arith.constant dense<0.000000e+00> : vector<2x128xf32>
    %125 = tpu.matmul %124, %13, %cst_22 {dimension_numbers = #tpu.dot_dimension_numbers<[1], [0], [0], [1], [0, 0, 1, 1], [], []>} : vector<2x32xbf16>, vector<32x128xbf16>, vector<2x128xf32> -> vector<2x128xf32>
    %126 = arith.addf %123, %125 : vector<2x128xf32>
    %127 = arith.negf %126 : vector<2x128xf32>
    %128 = math.exp %127 : vector<2x128xf32>
    %cst_23 = arith.constant 1.000000e+00 : f32
    %129 = vector.broadcast %cst_23 : f32 to vector<2x128xf32>
    %130 = arith.addf %129, %128 : vector<2x128xf32>
    %131 = arith.divf %129, %130 : vector<2x128xf32>
    %132 = math.tanh %126 : vector<2x128xf32>
    %133 = vector.extract_strided_slice %131 {offsets = [0, 0], sizes = [2, 32], strides = [1, 1]} : vector<2x128xf32> to vector<2x32xf32>
    %134 = vector.extract_strided_slice %131 {offsets = [0, 32], sizes = [2, 32], strides = [1, 1]} : vector<2x128xf32> to vector<2x32xf32>
    %135 = vector.extract_strided_slice %132 {offsets = [0, 64], sizes = [2, 32], strides = [1, 1]} : vector<2x128xf32> to vector<2x32xf32>
    %136 = vector.extract_strided_slice %131 {offsets = [0, 96], sizes = [2, 32], strides = [1, 1]} : vector<2x128xf32> to vector<2x32xf32>
    %137 = arith.mulf %134, %118 : vector<2x32xf32>
    %138 = arith.mulf %133, %135 : vector<2x32xf32>
    %139 = arith.addf %137, %138 : vector<2x32xf32>
    %140 = math.tanh %139 : vector<2x32xf32>
    %141 = arith.mulf %136, %140 : vector<2x32xf32>
    %142 = vector.extract_strided_slice %11 {offsets = [12, 0], sizes = [2, 128], strides = [1, 1]} : vector<16x256xf32> to vector<2x128xf32>
    %143 = vector.broadcast %12 : vector<1x128xf32> to vector<2x128xf32>
    %144 = arith.addf %142, %143 : vector<2x128xf32>
    %145 = arith.truncf %141 : vector<2x32xf32> to vector<2x32xbf16>
    %cst_24 = arith.constant dense<0.000000e+00> : vector<2x128xf32>
    %146 = tpu.matmul %145, %13, %cst_24 {dimension_numbers = #tpu.dot_dimension_numbers<[1], [0], [0], [1], [0, 0, 1, 1], [], []>} : vector<2x32xbf16>, vector<32x128xbf16>, vector<2x128xf32> -> vector<2x128xf32>
    %147 = arith.addf %144, %146 : vector<2x128xf32>
    %148 = arith.negf %147 : vector<2x128xf32>
    %149 = math.exp %148 : vector<2x128xf32>
    %cst_25 = arith.constant 1.000000e+00 : f32
    %150 = vector.broadcast %cst_25 : f32 to vector<2x128xf32>
    %151 = arith.addf %150, %149 : vector<2x128xf32>
    %152 = arith.divf %150, %151 : vector<2x128xf32>
    %153 = math.tanh %147 : vector<2x128xf32>
    %154 = vector.extract_strided_slice %152 {offsets = [0, 0], sizes = [2, 32], strides = [1, 1]} : vector<2x128xf32> to vector<2x32xf32>
    %155 = vector.extract_strided_slice %152 {offsets = [0, 32], sizes = [2, 32], strides = [1, 1]} : vector<2x128xf32> to vector<2x32xf32>
    %156 = vector.extract_strided_slice %153 {offsets = [0, 64], sizes = [2, 32], strides = [1, 1]} : vector<2x128xf32> to vector<2x32xf32>
    %157 = vector.extract_strided_slice %152 {offsets = [0, 96], sizes = [2, 32], strides = [1, 1]} : vector<2x128xf32> to vector<2x32xf32>
    %158 = arith.mulf %155, %139 : vector<2x32xf32>
    %159 = arith.mulf %154, %156 : vector<2x32xf32>
    %160 = arith.addf %158, %159 : vector<2x32xf32>
    %161 = math.tanh %160 : vector<2x32xf32>
    %162 = arith.mulf %157, %161 : vector<2x32xf32>
    %163 = vector.extract_strided_slice %11 {offsets = [14, 0], sizes = [2, 128], strides = [1, 1]} : vector<16x256xf32> to vector<2x128xf32>
    %164 = vector.broadcast %12 : vector<1x128xf32> to vector<2x128xf32>
    %165 = arith.addf %163, %164 : vector<2x128xf32>
    %166 = arith.truncf %162 : vector<2x32xf32> to vector<2x32xbf16>
    %cst_26 = arith.constant dense<0.000000e+00> : vector<2x128xf32>
    %167 = tpu.matmul %166, %13, %cst_26 {dimension_numbers = #tpu.dot_dimension_numbers<[1], [0], [0], [1], [0, 0, 1, 1], [], []>} : vector<2x32xbf16>, vector<32x128xbf16>, vector<2x128xf32> -> vector<2x128xf32>
    %168 = arith.addf %165, %167 : vector<2x128xf32>
    %169 = arith.negf %168 : vector<2x128xf32>
    %170 = math.exp %169 : vector<2x128xf32>
    %cst_27 = arith.constant 1.000000e+00 : f32
    %171 = vector.broadcast %cst_27 : f32 to vector<2x128xf32>
    %172 = arith.addf %171, %170 : vector<2x128xf32>
    %173 = arith.divf %171, %172 : vector<2x128xf32>
    %174 = math.tanh %168 : vector<2x128xf32>
    %175 = vector.extract_strided_slice %173 {offsets = [0, 0], sizes = [2, 32], strides = [1, 1]} : vector<2x128xf32> to vector<2x32xf32>
    %176 = vector.extract_strided_slice %173 {offsets = [0, 32], sizes = [2, 32], strides = [1, 1]} : vector<2x128xf32> to vector<2x32xf32>
    %177 = vector.extract_strided_slice %174 {offsets = [0, 64], sizes = [2, 32], strides = [1, 1]} : vector<2x128xf32> to vector<2x32xf32>
    %178 = vector.extract_strided_slice %173 {offsets = [0, 96], sizes = [2, 32], strides = [1, 1]} : vector<2x128xf32> to vector<2x32xf32>
    %179 = arith.mulf %176, %160 : vector<2x32xf32>
    %180 = arith.mulf %175, %177 : vector<2x32xf32>
    %181 = arith.addf %179, %180 : vector<2x32xf32>
    %182 = math.tanh %181 : vector<2x32xf32>
    %183 = arith.mulf %178, %182 : vector<2x32xf32>
    %184 = vector.extract_strided_slice %11 {offsets = [14, 128], sizes = [2, 128], strides = [1, 1]} : vector<16x256xf32> to vector<2x128xf32>
    %c0_28 = arith.constant 0 : index
    %c0_29 = arith.constant 0 : index
    %185 = vector.load %arg5[%c0_28, %c0_29] : memref<1x128xf32, #tpu.memory_space<vmem>>, vector<1x128xf32>
    %186 = vector.broadcast %185 : vector<1x128xf32> to vector<2x128xf32>
    %187 = arith.addf %184, %186 : vector<2x128xf32>
    %188 = arith.negf %187 : vector<2x128xf32>
    %189 = math.exp %188 : vector<2x128xf32>
    %cst_30 = arith.constant 1.000000e+00 : f32
    %190 = vector.broadcast %cst_30 : f32 to vector<2x128xf32>
    %191 = arith.addf %190, %189 : vector<2x128xf32>
    %192 = arith.divf %190, %191 : vector<2x128xf32>
    %193 = vector.extract_strided_slice %192 {offsets = [0, 0], sizes = [2, 32], strides = [1, 1]} : vector<2x128xf32> to vector<2x32xf32>
    %194 = vector.extract_strided_slice %187 {offsets = [0, 64], sizes = [2, 32], strides = [1, 1]} : vector<2x128xf32> to vector<2x32xf32>
    %195 = math.tanh %194 : vector<2x32xf32>
    %196 = vector.extract_strided_slice %192 {offsets = [0, 96], sizes = [2, 32], strides = [1, 1]} : vector<2x128xf32> to vector<2x32xf32>
    %197 = arith.mulf %193, %195 : vector<2x32xf32>
    %198 = math.tanh %197 : vector<2x32xf32>
    %199 = arith.mulf %196, %198 : vector<2x32xf32>
    %200 = arith.truncf %183 : vector<2x32xf32> to vector<2x32xbf16>
    %c0_31 = arith.constant 0 : index
    %c0_32 = arith.constant 0 : index
    %201 = vector.load %arg6[%c0_31, %c0_32] : memref<32x5xbf16, #tpu.memory_space<vmem>>, vector<32x5xbf16>
    %cst_33 = arith.constant dense<0.000000e+00> : vector<2x5xf32>
    %202 = tpu.matmul %200, %201, %cst_33 {dimension_numbers = #tpu.dot_dimension_numbers<[1], [0], [0], [1], [0, 0, 1, 1], [], []>} : vector<2x32xbf16>, vector<32x5xbf16>, vector<2x5xf32> -> vector<2x5xf32>
    %203 = arith.truncf %199 : vector<2x32xf32> to vector<2x32xbf16>
    %c0_34 = arith.constant 0 : index
    %c0_35 = arith.constant 0 : index
    %204 = vector.load %arg7[%c0_34, %c0_35] : memref<32x5xbf16, #tpu.memory_space<vmem>>, vector<32x5xbf16>
    %cst_36 = arith.constant dense<0.000000e+00> : vector<2x5xf32>
    %205 = tpu.matmul %203, %204, %cst_36 {dimension_numbers = #tpu.dot_dimension_numbers<[1], [0], [0], [1], [0, 0, 1, 1], [], []>} : vector<2x32xbf16>, vector<32x5xbf16>, vector<2x5xf32> -> vector<2x5xf32>
    %206 = arith.addf %202, %205 : vector<2x5xf32>
    %c0_37 = arith.constant 0 : index
    %c0_38 = arith.constant 0 : index
    %207 = vector.load %arg8[%c0_37, %c0_38] : memref<1x5xf32, #tpu.memory_space<vmem>>, vector<1x5xf32>
    %208 = vector.broadcast %207 : vector<1x5xf32> to vector<2x5xf32>
    %209 = arith.addf %206, %208 : vector<2x5xf32>
    %c0_39 = arith.constant 0 : index
    %c0_40 = arith.constant 0 : index
    %210 = vector.load %arg9[%c0_39, %c0_40] : memref<2x5xf32, #tpu.memory_space<vmem>>, vector<2x5xf32>
    tpu.vector_store %arg9[%c0_39, %c0_40], %209 {strides = array<i32>} : memref<2x5xf32, #tpu.memory_space<vmem>>, vector<2x5xf32>,
    return
  }
}

</mosaic_0001>

<llo_original>
// kernel: my_classifier_forward.1
$region0: #{my_classifier_forward.1}
  #allocation0 [shape = 'u32[]', space=smem, size = 0x4, offset = 0x4, fixed_abs, tag = 'smem constant byte address 0x4 - core index']
  #allocation1 [shape = 'u32[144,128]{1,0:T(1,128)}', space=vmem, size = 0x12000, scoped, tag = 'internal scratch']
  %s0 = inlined_call_operand.vmem [shape: s32[16,1], index: 0, kind: input, shape index: {}]
  %s1 = inlined_call_operand.vmem [shape: bf16[50,16], index: 1, kind: input, shape index: {}]
  %s2 = inlined_call_operand.vmem [shape: bf16[16,256], index: 2, kind: input, shape index: {}]
  %s3 = inlined_call_operand.vmem [shape: f32[1,128], index: 3, kind: input, shape index: {}]
  %s4 = inlined_call_operand.vmem [shape: bf16[32,128], index: 4, kind: input, shape index: {}]
  %s5 = inlined_call_operand.vmem [shape: f32[1,128], index: 5, kind: input, shape index: {}]
  %s6 = inlined_call_operand.vmem [shape: bf16[32,5], index: 6, kind: input, shape index: {}]
  %s7 = inlined_call_operand.vmem [shape: bf16[32,5], index: 7, kind: input, shape index: {}]
  %s8 = inlined_call_operand.vmem [shape: f32[1,5], index: 8, kind: input, shape index: {}]
  %s9 = inlined_call_operand.hbm [shape: f32[2,5], index: 9, kind: output, shape index: {}]
  %s10 = sld [smem:[#allocation0]]
  $region46: #{my_classifier_forward.1} parent=0
    _
  %s12 = ssub.s32 1, %s10
  %s13 = scalar_select 0, %s12, %s10
  $region1: #{my_classifier_forward.1} parent=0
    #allocation2 [shape = 'u8[1024]{0}', space=vmem, size = 0x400, scoped, tag = 'output window, operand 0, single buffered']
    #allocation3 [shape = 's32[1]{0}', space=sflag, size = 0x4, scoped, tag = 'scoped memory for my_classifier_forward.1']
    %14 = vsyncpa [#allocation3], 0
    // Predicated region
    $region2: #{my_classifier_forward.1} parent=1 // pred_check
      _
    $region3: #{my_classifier_forward.1} parent=1 // pred_check_branch
      %16 = sbr.rel (0) target = $region5
    $region4: #{my_classifier_forward.1} parent=1 // pred_region
      _
    $region5: #{my_classifier_forward.1} parent=1 // pred_fallthru
      _
    // Predicated region
    $region6: #{my_classifier_forward.1} parent=1 // pred_check
      _
    $region7: #{my_classifier_forward.1} parent=1 // pred_check_branch
      %18 = sbr.rel (0) target = $region9
    $region8: #{my_classifier_forward.1} parent=1 // pred_region
      _
    $region9: #{my_classifier_forward.1} parent=1 // pred_fallthru
      _
    // Predicated region
    $region10: #{my_classifier_forward.1} parent=1 // pred_check
      _
    $region11: #{my_classifier_forward.1} parent=1 // pred_check_branch
      %20 = sbr.rel (0) target = $region13
    $region12: #{my_classifier_forward.1} parent=1 // pred_region
      _
    $region13: #{my_classifier_forward.1} parent=1 // pred_fallthru
      _
    // Predicated region
    $region14: #{my_classifier_forward.1} parent=1 // pred_check
      _
    $region15: #{my_classifier_forward.1} parent=1 // pred_check_branch
      %22 = sbr.rel (0) target = $region17
    $region16: #{my_classifier_forward.1} parent=1 // pred_region
      _
    $region17: #{my_classifier_forward.1} parent=1 // pred_fallthru
      _
    // Predicated region
    $region18: #{my_classifier_forward.1} parent=1 // pred_check
      _
    $region19: #{my_classifier_forward.1} parent=1 // pred_check_branch
      %24 = sbr.rel (0) target = $region21
    $region20: #{my_classifier_forward.1} parent=1 // pred_region
      _
    $region21: #{my_classifier_forward.1} parent=1 // pred_fallthru
      _
    // Predicated region
    $region22: #{my_classifier_forward.1} parent=1 // pred_check
      _
    $region23: #{my_classifier_forward.1} parent=1 // pred_check_branch
      %26 = sbr.rel (0) target = $region25
    $region24: #{my_classifier_forward.1} parent=1 // pred_region
      _
    $region25: #{my_classifier_forward.1} parent=1 // pred_fallthru
      _
    // Predicated region
    $region26: #{my_classifier_forward.1} parent=1 // pred_check
      _
    $region27: #{my_classifier_forward.1} parent=1 // pred_check_branch
      %28 = sbr.rel (0) target = $region29
    $region28: #{my_classifier_forward.1} parent=1 // pred_region
      _
    $region29: #{my_classifier_forward.1} parent=1 // pred_fallthru
      _
    // Predicated region
    $region30: #{my_classifier_forward.1} parent=1 // pred_check
      _
    $region31: #{my_classifier_forward.1} parent=1 // pred_check_branch
      %30 = sbr.rel (0) target = $region33
    $region32: #{my_classifier_forward.1} parent=1 // pred_region
      _
    $region33: #{my_classifier_forward.1} parent=1 // pred_fallthru
      _
    // Predicated region
    $region34: #{my_classifier_forward.1} parent=1 // pred_check
      _
    $region35: #{my_classifier_forward.1} parent=1 // pred_check_branch
      %32 = sbr.rel (0) target = $region37
    $region36: #{my_classifier_forward.1} parent=1 // pred_region
      _
    $region37: #{my_classifier_forward.1} parent=1 // pred_fallthru
      _
    %v34 = vld [vmem:[%s0] sm:$0xff]
    %v35 = vld [vmem:[%s0 + $0x8] sm:$0xff]
    %v36 = vlaneseq
    %v37 = vand.u32 %v36, 127
    %38 = vset.pattern.permute.xlu0 0
    %39 = vperm.xlu0 %38, %v34
    %v40 = vpop.permute.xlu0 %39
    %41 = vset.pattern.permute.xlu0 0
    %42 = vperm.xlu0 %41, %v35
    %v43 = vpop.permute.xlu0 %42
    %vm44 = vcmp.eq.s32.totalorder %v40, %v37
    %vm45 = vcmp.eq.s32.totalorder %v43, %v37
    %v46 = vsel %vm44, 1, 0
    %v47 = vsel %vm45, 1, 0
    %v48 = vcvt.s32.f32 %v46
    %v49 = vcvt.s32.f32 %v47
    %v50 = vpack.c.bf16 %v49, %v48
    %v51 = vld [vmem:[%s1] sm:$0xf]
    %v52 = vld [vmem:[%s1 + $0x4] sm:$0xf]
    %v53 = vld [vmem:[%s1 + $0x8] sm:$0xf]
    %v54 = vld [vmem:[%s1 + $0xc] sm:$0xf]
    %v55 = vld [vmem:[%s1 + $0x10] sm:$0xf]
    %v56 = vld [vmem:[%s1 + $0x14] sm:$0xf]
    %v57 = vld [vmem:[%s1 + $0x18] sm:$0x1]
    %v65 = vunpack.c.l.b16 %v51
    %v66 = vunpack.c.l.b16 %v52
    %v67 = vunpack.c.l.b16 %v53
    %v68 = vunpack.c.l.b16 %v54
    %v69 = vunpack.c.l.b16 %v55
    %v70 = vunpack.c.l.b16 %v56
    %v71 = vunpack.c.l.b16 %v57
    %v72 = vpack.c.b16 %v66, %v65
    %v73 = vpack.c.b16 %v68, %v67
    %v74 = vpack.c.b16 %v70, %v69
    %v75 = vpack.c.b16 %v71, %v71
    %vm79 = vcmask 408576
    %v81 = vsel %vm79, %v50, 0
    %vm83 = vcmask 1040384
    %v85 = vsel %vm83, %v75, 0
    %87 = vmatprep.subr.bf16.mxu0 0
    %88 = vmatpush1.bf16.msra.mxu0 %v72
    %89 = vmatprep.subr.bf16.mxu0 0
    %90 = vmatpush1.bf16.msra.mxu0 %v73
    %91 = vmatprep.subr.bf16.mxu0 0
    %92 = vmatpush1.bf16.msra.mxu0 %v74
    %93 = vmatprep.subr.bf16.mxu0 0
    %94 = vmatpush1.bf16.msra.mxu0 %v85
    %95 = vmatprep.subr.bf16.mxu0 0
    %96 = vmatpush1.bf16.msra.mxu0 0
    %97 = vmatprep.subr.bf16.mxu0 0
    %98 = vmatpush1.bf16.msra.mxu0 0
    %99 = vmatprep.subr.bf16.mxu0 0
    %100 = vmatpush1.bf16.msra.mxu0 0
    %101 = vmatprep.subr.bf16.mxu0 0
    %102 = vmatpush1.bf16.msra.mxu0 0
    %103 = vmatprep.subr.bf16.mxu0 0
    %104 = vmatpush1.bf16.msra.mxu0 0
    %105 = vmatprep.subr.bf16.mxu0 0
    %106 = vmatpush1.bf16.msra.mxu0 0
    %107 = vmatprep.subr.bf16.mxu0 0
    %108 = vmatpush1.bf16.msra.mxu0 0
    %109 = vmatprep.subr.bf16.mxu0 0
    %110 = vmatpush1.bf16.msra.mxu0 0
    %111 = vmatprep.subr.bf16.mxu0 0
    %112 = vmatpush1.bf16.msra.mxu0 0
    %113 = vmatprep.subr.bf16.mxu0 0
    %114 = vmatpush1.bf16.msra.mxu0 0
    %115 = vmatprep.subr.bf16.mxu0 0
    %116 = vmatpush1.bf16.msra.mxu0 0
    %117 = vmatprep.subr.bf16.mxu0 0
    %118 = vmatpush1.bf16.msra.mxu0 0
    %119 = vmatprep.mubr.bf16.mxu0 0
    %120 = vmatmul.mubr.bf16.gmra.mrb[0].mxu0 %v81
    %v121 = vpop.f32.mrb[0].mxu0
    %v122 = vadd.f32 0.0, %v121
    %v123 = vpop.f32.mrb[0].mxu0
    %v124 = vpop.f32.mrb[0].mxu0
    %v125 = vadd.f32 0.0, %v124
    %v126 = vpop.f32.mrb[0].mxu0
    %127 = vdwg.mxu0
    %v128 = vpack.c.bf16 %v125, %v122
    %v129 = vld [vmem:[%s2] sm:$0xff]
    %v130 = vld [vmem:[%s2 + $0x8] sm:$0xff]
    %v133 = vunpack.c.l.b16 %v129
    %v134 = vunpack.c.h.b16 %v129
    %v135 = vunpack.c.l.b16 %v130
    %v136 = vunpack.c.h.b16 %v130
    %v137 = vpack.c.b16 %v135, %v133
    %v138 = vpack.c.b16 %v136, %v134
    %vm141 = vcmask 130048
    %v143 = vsel %vm141, %v128, 0
    %145 = vmatprep.subr.bf16.mxu0 %v138
    %146 = vmatpush1.bf16.msra.mxu0 %v137
    %147 = vmatprep.subr.bf16.mxu0 0
    %148 = vmatpush1.bf16.msra.mxu0 0
    %149 = vmatprep.subr.bf16.mxu0 0
    %150 = vmatpush1.bf16.msra.mxu0 0
    %151 = vmatprep.subr.bf16.mxu0 0
    %152 = vmatpush1.bf16.msra.mxu0 0
    %153 = vmatprep.subr.bf16.mxu0 0
    %154 = vmatpush1.bf16.msra.mxu0 0
    %155 = vmatprep.subr.bf16.mxu0 0
    %156 = vmatpush1.bf16.msra.mxu0 0
    %157 = vmatprep.subr.bf16.mxu0 0
    %158 = vmatpush1.bf16.msra.mxu0 0
    %159 = vmatprep.subr.bf16.mxu0 0
    %160 = vmatpush1.bf16.msra.mxu0 0
    %161 = vmatprep.subr.bf16.mxu0 0
    %162 = vmatpush1.bf16.msra.mxu0 0
    %163 = vmatprep.subr.bf16.mxu0 0
    %164 = vmatpush1.bf16.msra.mxu0 0
    %165 = vmatprep.subr.bf16.mxu0 0
    %166 = vmatpush1.bf16.msra.mxu0 0
    %167 = vmatprep.subr.bf16.mxu0 0
    %168 = vmatpush1.bf16.msra.mxu0 0
    %169 = vmatprep.subr.bf16.mxu0 0
    %170 = vmatpush1.bf16.msra.mxu0 0
    %171 = vmatprep.subr.bf16.mxu0 0
    %172 = vmatpush1.bf16.msra.mxu0 0
    %173 = vmatprep.subr.bf16.mxu0 0
    %174 = vmatpush1.bf16.msra.mxu0 0
    %175 = vmatprep.subr.bf16.mxu0 0
    %176 = vmatpush1.bf16.msra.mxu0 0
    %177 = vmatprep.mubr.bf16.mxu0 0
    %178 = vmatmul.mubr.bf16.gmra.mrb[0].mxu0 %v143
    %v179 = vpop.f32.mrb[0].mxu0
    %v180 = vadd.f32 0.0, %v179
    %v181 = vpop.f32.mrb[0].mxu0
    %v182 = vpop.f32.mrb[0].mxu0
    %v183 = vadd.f32 0.0, %v182
    %v184 = vpop.f32.mrb[0].mxu0
    %v185 = vadd.f32 0.0, %v184
    %186 = vdwg.mxu0
    %v187 = vld [vmem:[%s3] sm:$0x1]
    %v188 = vld [vmem:[%s4] sm:$0xf]
    %v189 = vld [vmem:[%s4 + $0x4] sm:$0xf]
    %v190 = vld [vmem:[%s4 + $0x8] sm:$0xf]
    %v191 = vld [vmem:[%s4 + $0xc] sm:$0xf]
    %v193 = vlaneseq
    %v194 = vshrl.u32 %v193, 7
    %v195 = vsub.s32 0, %v194
    %v196 = vrot.slane %v187, %v195
    %v198 = vadd.f32 %v180, %v196
    %v203 = vunpack.c.l.b16 %v188
    %v204 = vunpack.c.l.b16 %v189
    %v205 = vunpack.c.l.b16 %v190
    %v206 = vunpack.c.l.b16 %v191
    %v207 = vpack.c.b16 %v204, %v203
    %v208 = vpack.c.b16 %v206, %v205
    %vm211 = vcmask 261120
    %v213 = vsel %vm211, 0, 0
    %215 = vmatprep.subr.bf16.mxu0 0
    %216 = vmatpush1.bf16.msra.mxu0 %v207
    %217 = vmatprep.subr.bf16.mxu0 0
    %218 = vmatpush1.bf16.msra.mxu0 %v208
    %219 = vmatprep.subr.bf16.mxu0 0
    %220 = vmatpush1.bf16.msra.mxu0 0
    %221 = vmatprep.subr.bf16.mxu0 0
    %222 = vmatpush1.bf16.msra.mxu0 0
    %223 = vmatprep.subr.bf16.mxu0 0
    %224 = vmatpush1.bf16.msra.mxu0 0
    %225 = vmatprep.subr.bf16.mxu0 0
    %226 = vmatpush1.bf16.msra.mxu0 0
    %227 = vmatprep.subr.bf16.mxu0 0
    %228 = vmatpush1.bf16.msra.mxu0 0
    %229 = vmatprep.subr.bf16.mxu0 0
    %230 = vmatpush1.bf16.msra.mxu0 0
    %231 = vmatprep.subr.bf16.mxu0 0
    %232 = vmatpush1.bf16.msra.mxu0 0
    %233 = vmatprep.subr.bf16.mxu0 0
    %234 = vmatpush1.bf16.msra.mxu0 0
    %235 = vmatprep.subr.bf16.mxu0 0
    %236 = vmatpush1.bf16.msra.mxu0 0
    %237 = vmatprep.subr.bf16.mxu0 0
    %238 = vmatpush1.bf16.msra.mxu0 0
    %239 = vmatprep.subr.bf16.mxu0 0
    %240 = vmatpush1.bf16.msra.mxu0 0
    %241 = vmatprep.subr.bf16.mxu0 0
    %242 = vmatpush1.bf16.msra.mxu0 0
    %243 = vmatprep.subr.bf16.mxu0 0
    %244 = vmatpush1.bf16.msra.mxu0 0
    %245 = vmatprep.subr.bf16.mxu0 0
    %246 = vmatpush1.bf16.msra.mxu0 0
    %247 = vmatprep.mubr.bf16.mxu0 0
    %248 = vmatmul.mubr.bf16.gmra.mrb[0].mxu0 %v213
    %v249 = vpop.f32.mrb[0].mxu0
    %v250 = vadd.f32 0.0, %v249
    %v251 = vpop.f32.mrb[0].mxu0
    %v252 = vpop.f32.mrb[0].mxu0
    %v253 = vpop.f32.mrb[0].mxu0
    %254 = vdwg.mxu0
    %v255 = vadd.f32 %v198, %v250
    %v256 = vxor.u32 %v255, 2147483648
    %v257 = vmul.f32 %v256, 1.442695
    %v258 = vpow.pop %v257
    %v259 = vadd.f32 %v258, 1.0
    %v260 = vrcp.pop %v259
    %v261 = vmul.f32 1.0, %v260
    %v262 = vtanh.pop %v255
    %v263 = vmul.f32 %v261, 0.0
    %265 = vrot.lane.b32.xlu0 %v262, 64
    %v266 = vpop.permute.xlu0 %265
    %v268 = vmul.f32 %v261, %v266
    %270 = vrot.lane.b32.xlu0 %v268, 32
    %v271 = vpop.permute.xlu0 %270
    %v273 = vadd.f32 %v263, %v271
    %v274 = vtanh.pop %v273
    %276 = vrot.lane.b32.xlu0 %v274, 64
    %v277 = vpop.permute.xlu0 %276
    %v279 = vmul.f32 %v261, %v277
    %v280 = vpack.c.bf16 %v279, %v279
    %282 = vrot.lane.b32.xlu0 %v280, 32
    %v283 = vpop.permute.xlu0 %282
    %v285 = vsel %vm211, %v283, 0
    %287 = vmatprep.subr.bf16.mxu0 0
    %288 = vmatpush1.bf16.msra.mxu0 %v207
    %289 = vmatprep.subr.bf16.mxu0 0
    %290 = vmatpush1.bf16.msra.mxu0 %v208
    %291 = vmatprep.subr.bf16.mxu0 0
    %292 = vmatpush1.bf16.msra.mxu0 0
    %293 = vmatprep.subr.bf16.mxu0 0
    %294 = vmatpush1.bf16.msra.mxu0 0
    %295 = vmatprep.subr.bf16.mxu0 0
    %296 = vmatpush1.bf16.msra.mxu0 0
    %297 = vmatprep.subr.bf16.mxu0 0
    %298 = vmatpush1.bf16.msra.mxu0 0
    %299 = vmatprep.subr.bf16.mxu0 0
    %300 = vmatpush1.bf16.msra.mxu0 0
    %301 = vmatprep.subr.bf16.mxu0 0
    %302 = vmatpush1.bf16.msra.mxu0 0
    %303 = vmatprep.subr.bf16.mxu0 0
    %304 = vmatpush1.bf16.msra.mxu0 0
    %305 = vmatprep.subr.bf16.mxu0 0
    %306 = vmatpush1.bf16.msra.mxu0 0
    %307 = vmatprep.subr.bf16.mxu0 0
    %308 = vmatpush1.bf16.msra.mxu0 0
    %309 = vmatprep.subr.bf16.mxu0 0
    %310 = vmatpush1.bf16.msra.mxu0 0
    %311 = vmatprep.subr.bf16.mxu0 0
    %312 = vmatpush1.bf16.msra.mxu0 0
    %313 = vmatprep.subr.bf16.mxu0 0
    %314 = vmatpush1.bf16.msra.mxu0 0
    %315 = vmatprep.subr.bf16.mxu0 0
    %316 = vmatpush1.bf16.msra.mxu0 0
    %317 = vmatprep.subr.bf16.mxu0 0
    %318 = vmatpush1.bf16.msra.mxu0 0
    %319 = vmatprep.mubr.bf16.mxu0 0
    %320 = vmatmul.mubr.bf16.gmra.mrb[0].mxu0 %v285
    %v321 = vpop.f32.mrb[0].mxu0
    %v322 = vadd.f32 0.0, %v321
    %v323 = vpop.f32.mrb[0].mxu0
    %v324 = vpop.f32.mrb[0].mxu0
    %v325 = vpop.f32.mrb[0].mxu0
    %326 = vdwg.mxu0
    %v328 = vrot.slane %v322, 6
    %v330 = vadd.f32 %v198, %v328
    %v331 = vxor.u32 %v330, 2147483648
    %v332 = vmul.f32 %v331, 1.442695
    %v333 = vpow.pop %v332
    %v334 = vadd.f32 %v333, 1.0
    %v335 = vrcp.pop %v334
    %v336 = vmul.f32 1.0, %v335
    %v337 = vtanh.pop %v330
    %v339 = vrot.slane %v273, 6
    %v341 = vmul.f32 %v336, %v339
    %343 = vrot.lane.b32.xlu0 %v337, 64
    %v344 = vpop.permute.xlu0 %343
    %v346 = vmul.f32 %v336, %v344
    %348 = vrot.lane.b32.xlu0 %v346, 32
    %v349 = vpop.permute.xlu0 %348
    %v351 = vadd.f32 %v341, %v349
    %v352 = vtanh.pop %v351
    %354 = vrot.lane.b32.xlu0 %v352, 64
    %v355 = vpop.permute.xlu0 %354
    %v357 = vmul.f32 %v336, %v355
    %v358 = vpack.c.bf16 %v357, %v357
    %v360 = vrot.slane %v358, 1
    %361 = vrot.lane.b32.xlu0 %v360, 32
    %v362 = vpop.permute.xlu0 %361
    %v364 = vsel %vm211, %v362, 0
    %366 = vmatprep.subr.bf16.mxu0 0
    %367 = vmatpush1.bf16.msra.mxu0 %v207
    %368 = vmatprep.subr.bf16.mxu0 0
    %369 = vmatpush1.bf16.msra.mxu0 %v208
    %370 = vmatprep.subr.bf16.mxu0 0
    %371 = vmatpush1.bf16.msra.mxu0 0
    %372 = vmatprep.subr.bf16.mxu0 0
    %373 = vmatpush1.bf16.msra.mxu0 0
    %374 = vmatprep.subr.bf16.mxu0 0
    %375 = vmatpush1.bf16.msra.mxu0 0
    %376 = vmatprep.subr.bf16.mxu0 0
    %377 = vmatpush1.bf16.msra.mxu0 0
    %378 = vmatprep.subr.bf16.mxu0 0
    %379 = vmatpush1.bf16.msra.mxu0 0
    %380 = vmatprep.subr.bf16.mxu0 0
    %381 = vmatpush1.bf16.msra.mxu0 0
    %382 = vmatprep.subr.bf16.mxu0 0
    %383 = vmatpush1.bf16.msra.mxu0 0
    %384 = vmatprep.subr.bf16.mxu0 0
    %385 = vmatpush1.bf16.msra.mxu0 0
    %386 = vmatprep.subr.bf16.mxu0 0
    %387 = vmatpush1.bf16.msra.mxu0 0
    %388 = vmatprep.subr.bf16.mxu0 0
    %389 = vmatpush1.bf16.msra.mxu0 0
    %390 = vmatprep.subr.bf16.mxu0 0
    %391 = vmatpush1.bf16.msra.mxu0 0
    %392 = vmatprep.subr.bf16.mxu0 0
    %393 = vmatpush1.bf16.msra.mxu0 0
    %394 = vmatprep.subr.bf16.mxu0 0
    %395 = vmatpush1.bf16.msra.mxu0 0
    %396 = vmatprep.subr.bf16.mxu0 0
    %397 = vmatpush1.bf16.msra.mxu0 0
    %398 = vmatprep.mubr.bf16.mxu0 0
    %399 = vmatmul.mubr.bf16.gmra.mrb[0].mxu0 %v364
    %v400 = vpop.f32.mrb[0].mxu0
    %v401 = vadd.f32 0.0, %v400
    %v402 = vpop.f32.mrb[0].mxu0
    %v403 = vpop.f32.mrb[0].mxu0
    %v404 = vpop.f32.mrb[0].mxu0
    %405 = vdwg.mxu0
    %v407 = vrot.slane %v401, 4
    %v409 = vadd.f32 %v198, %v407
    %v410 = vxor.u32 %v409, 2147483648
    %v411 = vmul.f32 %v410, 1.442695
    %v412 = vpow.pop %v411
    %v413 = vadd.f32 %v412, 1.0
    %v414 = vrcp.pop %v413
    %v415 = vmul.f32 1.0, %v414
    %v416 = vtanh.pop %v409
    %v418 = vrot.slane %v351, 6
    %v420 = vmul.f32 %v415, %v418
    %422 = vrot.lane.b32.xlu0 %v416, 64
    %v423 = vpop.permute.xlu0 %422
    %v425 = vmul.f32 %v415, %v423
    %427 = vrot.lane.b32.xlu0 %v425, 32
    %v428 = vpop.permute.xlu0 %427
    %v430 = vadd.f32 %v420, %v428
    %v431 = vtanh.pop %v430
    %433 = vrot.lane.b32.xlu0 %v431, 64
    %v434 = vpop.permute.xlu0 %433
    %v436 = vmul.f32 %v415, %v434
    %v437 = vpack.c.bf16 %v436, %v436
    %v439 = vrot.slane %v437, 2
    %440 = vrot.lane.b32.xlu0 %v439, 32
    %v441 = vpop.permute.xlu0 %440
    %v443 = vsel %vm211, %v441, 0
    %445 = vmatprep.subr.bf16.mxu0 0
    %446 = vmatpush1.bf16.msra.mxu0 %v207
    %447 = vmatprep.subr.bf16.mxu0 0
    %448 = vmatpush1.bf16.msra.mxu0 %v208
    %449 = vmatprep.subr.bf16.mxu0 0
    %450 = vmatpush1.bf16.msra.mxu0 0
    %451 = vmatprep.subr.bf16.mxu0 0
    %452 = vmatpush1.bf16.msra.mxu0 0
    %453 = vmatprep.subr.bf16.mxu0 0
    %454 = vmatpush1.bf16.msra.mxu0 0
    %455 = vmatprep.subr.bf16.mxu0 0
    %456 = vmatpush1.bf16.msra.mxu0 0
    %457 = vmatprep.subr.bf16.mxu0 0
    %458 = vmatpush1.bf16.msra.mxu0 0
    %459 = vmatprep.subr.bf16.mxu0 0
    %460 = vmatpush1.bf16.msra.mxu0 0
    %461 = vmatprep.subr.bf16.mxu0 0
    %462 = vmatpush1.bf16.msra.mxu0 0
    %463 = vmatprep.subr.bf16.mxu0 0
    %464 = vmatpush1.bf16.msra.mxu0 0
    %465 = vmatprep.subr.bf16.mxu0 0
    %466 = vmatpush1.bf16.msra.mxu0 0
    %467 = vmatprep.subr.bf16.mxu0 0
    %468 = vmatpush1.bf16.msra.mxu0 0
    %469 = vmatprep.subr.bf16.mxu0 0
    %470 = vmatpush1.bf16.msra.mxu0 0
    %471 = vmatprep.subr.bf16.mxu0 0
    %472 = vmatpush1.bf16.msra.mxu0 0
    %473 = vmatprep.subr.bf16.mxu0 0
    %474 = vmatpush1.bf16.msra.mxu0 0
    %475 = vmatprep.subr.bf16.mxu0 0
    %476 = vmatpush1.bf16.msra.mxu0 0
    %477 = vmatprep.mubr.bf16.mxu0 0
    %478 = vmatmul.mubr.bf16.gmra.mrb[0].mxu0 %v443
    %v479 = vpop.f32.mrb[0].mxu0
    %v480 = vadd.f32 0.0, %v479
    %v481 = vpop.f32.mrb[0].mxu0
    %v482 = vpop.f32.mrb[0].mxu0
    %v483 = vpop.f32.mrb[0].mxu0
    %484 = vdwg.mxu0
    %v486 = vrot.slane %v480, 2
    %v488 = vadd.f32 %v198, %v486
    %v489 = vxor.u32 %v488, 2147483648
    %v490 = vmul.f32 %v489, 1.442695
    %v491 = vpow.pop %v490
    %v492 = vadd.f32 %v491, 1.0
    %v493 = vrcp.pop %v492
    %v494 = vmul.f32 1.0, %v493
    %v495 = vtanh.pop %v488
    %v497 = vrot.slane %v430, 6
    %v499 = vmul.f32 %v494, %v497
    %501 = vrot.lane.b32.xlu0 %v495, 64
    %v502 = vpop.permute.xlu0 %501
    %v504 = vmul.f32 %v494, %v502
    %506 = vrot.lane.b32.xlu0 %v504, 32
    %v507 = vpop.permute.xlu0 %506
    %v509 = vadd.f32 %v499, %v507
    %v510 = vtanh.pop %v509
    %512 = vrot.lane.b32.xlu0 %v510, 64
    %v513 = vpop.permute.xlu0 %512
    %v515 = vmul.f32 %v494, %v513
    %v516 = vadd.f32 %v183, %v196
    %v517 = vpack.c.bf16 %v515, %v515
    %v519 = vrot.slane %v517, 3
    %520 = vrot.lane.b32.xlu0 %v519, 32
    %v521 = vpop.permute.xlu0 %520
    %v523 = vsel %vm211, %v521, 0
    %525 = vmatprep.subr.bf16.mxu0 0
    %526 = vmatpush1.bf16.msra.mxu0 %v207
    %527 = vmatprep.subr.bf16.mxu0 0
    %528 = vmatpush1.bf16.msra.mxu0 %v208
    %529 = vmatprep.subr.bf16.mxu0 0
    %530 = vmatpush1.bf16.msra.mxu0 0
    %531 = vmatprep.subr.bf16.mxu0 0
    %532 = vmatpush1.bf16.msra.mxu0 0
    %533 = vmatprep.subr.bf16.mxu0 0
    %534 = vmatpush1.bf16.msra.mxu0 0
    %535 = vmatprep.subr.bf16.mxu0 0
    %536 = vmatpush1.bf16.msra.mxu0 0
    %537 = vmatprep.subr.bf16.mxu0 0
    %538 = vmatpush1.bf16.msra.mxu0 0
    %539 = vmatprep.subr.bf16.mxu0 0
    %540 = vmatpush1.bf16.msra.mxu0 0
    %541 = vmatprep.subr.bf16.mxu0 0
    %542 = vmatpush1.bf16.msra.mxu0 0
    %543 = vmatprep.subr.bf16.mxu0 0
    %544 = vmatpush1.bf16.msra.mxu0 0
    %545 = vmatprep.subr.bf16.mxu0 0
    %546 = vmatpush1.bf16.msra.mxu0 0
    %547 = vmatprep.subr.bf16.mxu0 0
    %548 = vmatpush1.bf16.msra.mxu0 0
    %549 = vmatprep.subr.bf16.mxu0 0
    %550 = vmatpush1.bf16.msra.mxu0 0
    %551 = vmatprep.subr.bf16.mxu0 0
    %552 = vmatpush1.bf16.msra.mxu0 0
    %553 = vmatprep.subr.bf16.mxu0 0
    %554 = vmatpush1.bf16.msra.mxu0 0
    %555 = vmatprep.subr.bf16.mxu0 0
    %556 = vmatpush1.bf16.msra.mxu0 0
    %557 = vmatprep.mubr.bf16.mxu0 0
    %558 = vmatmul.mubr.bf16.gmra.mrb[0].mxu0 %v523
    %v559 = vpop.f32.mrb[0].mxu0
    %v560 = vadd.f32 0.0, %v559
    %v561 = vpop.f32.mrb[0].mxu0
    %v562 = vpop.f32.mrb[0].mxu0
    %v563 = vpop.f32.mrb[0].mxu0
    %564 = vdwg.mxu0
    %v565 = vadd.f32 %v516, %v560
    %v566 = vxor.u32 %v565, 2147483648
    %v567 = vmul.f32 %v566, 1.442695
    %v568 = vpow.pop %v567
    %v569 = vadd.f32 %v568, 1.0
    %v570 = vrcp.pop %v569
    %v571 = vmul.f32 1.0, %v570
    %v572 = vtanh.pop %v565
    %v574 = vrot.slane %v509, 6
    %v576 = vmul.f32 %v571, %v574
    %578 = vrot.lane.b32.xlu0 %v572, 64
    %v579 = vpop.permute.xlu0 %578
    %v581 = vmul.f32 %v571, %v579
    %583 = vrot.lane.b32.xlu0 %v581, 32
    %v584 = vpop.permute.xlu0 %583
    %v586 = vadd.f32 %v576, %v584
    %v587 = vtanh.pop %v586
    %589 = vrot.lane.b32.xlu0 %v587, 64
    %v590 = vpop.permute.xlu0 %589
    %v592 = vmul.f32 %v571, %v590
    %v593 = vpack.c.bf16 %v592, %v592
    %595 = vrot.lane.b32.xlu0 %v593, 32
    %v596 = vpop.permute.xlu0 %595
    %v598 = vsel %vm211, %v596, 0
    %600 = vmatprep.subr.bf16.mxu0 0
    %601 = vmatpush1.bf16.msra.mxu0 %v207
    %602 = vmatprep.subr.bf16.mxu0 0
    %603 = vmatpush1.bf16.msra.mxu0 %v208
    %604 = vmatprep.subr.bf16.mxu0 0
    %605 = vmatpush1.bf16.msra.mxu0 0
    %606 = vmatprep.subr.bf16.mxu0 0
    %607 = vmatpush1.bf16.msra.mxu0 0
    %608 = vmatprep.subr.bf16.mxu0 0
    %609 = vmatpush1.bf16.msra.mxu0 0
    %610 = vmatprep.subr.bf16.mxu0 0
    %611 = vmatpush1.bf16.msra.mxu0 0
    %612 = vmatprep.subr.bf16.mxu0 0
    %613 = vmatpush1.bf16.msra.mxu0 0
    %614 = vmatprep.subr.bf16.mxu0 0
    %615 = vmatpush1.bf16.msra.mxu0 0
    %616 = vmatprep.subr.bf16.mxu0 0
    %617 = vmatpush1.bf16.msra.mxu0 0
    %618 = vmatprep.subr.bf16.mxu0 0
    %619 = vmatpush1.bf16.msra.mxu0 0
    %620 = vmatprep.subr.bf16.mxu0 0
    %621 = vmatpush1.bf16.msra.mxu0 0
    %622 = vmatprep.subr.bf16.mxu0 0
    %623 = vmatpush1.bf16.msra.mxu0 0
    %624 = vmatprep.subr.bf16.mxu0 0
    %625 = vmatpush1.bf16.msra.mxu0 0
    %626 = vmatprep.subr.bf16.mxu0 0
    %627 = vmatpush1.bf16.msra.mxu0 0
    %628 = vmatprep.subr.bf16.mxu0 0
    %629 = vmatpush1.bf16.msra.mxu0 0
    %630 = vmatprep.subr.bf16.mxu0 0
    %631 = vmatpush1.bf16.msra.mxu0 0
    %632 = vmatprep.mubr.bf16.mxu0 0
    %633 = vmatmul.mubr.bf16.gmra.mrb[0].mxu0 %v598
    %v634 = vpop.f32.mrb[0].mxu0
    %v635 = vadd.f32 0.0, %v634
    %v636 = vpop.f32.mrb[0].mxu0
    %v637 = vpop.f32.mrb[0].mxu0
    %v638 = vpop.f32.mrb[0].mxu0
    %639 = vdwg.mxu0
    %v641 = vrot.slane %v635, 6
    %v643 = vadd.f32 %v516, %v641
    %v644 = vxor.u32 %v643, 2147483648
    %v645 = vmul.f32 %v644, 1.442695
    %v646 = vpow.pop %v645
    %v647 = vadd.f32 %v646, 1.0
    %v648 = vrcp.pop %v647
    %v649 = vmul.f32 1.0, %v648
    %v650 = vtanh.pop %v643
    %v652 = vrot.slane %v586, 6
    %v654 = vmul.f32 %v649, %v652
    %656 = vrot.lane.b32.xlu0 %v650, 64
    %v657 = vpop.permute.xlu0 %656
    %v659 = vmul.f32 %v649, %v657
    %661 = vrot.lane.b32.xlu0 %v659, 32
    %v662 = vpop.permute.xlu0 %661
    %v664 = vadd.f32 %v654, %v662
    %v665 = vtanh.pop %v664
    %667 = vrot.lane.b32.xlu0 %v665, 64
    %v668 = vpop.permute.xlu0 %667
    %v670 = vmul.f32 %v649, %v668
    %v671 = vpack.c.bf16 %v670, %v670
    %v673 = vrot.slane %v671, 1
    %674 = vrot.lane.b32.xlu0 %v673, 32
    %v675 = vpop.permute.xlu0 %674
    %v677 = vsel %vm211, %v675, 0
    %679 = vmatprep.subr.bf16.mxu0 0
    %680 = vmatpush1.bf16.msra.mxu0 %v207
    %681 = vmatprep.subr.bf16.mxu0 0
    %682 = vmatpush1.bf16.msra.mxu0 %v208
    %683 = vmatprep.subr.bf16.mxu0 0
    %684 = vmatpush1.bf16.msra.mxu0 0
    %685 = vmatprep.subr.bf16.mxu0 0
    %686 = vmatpush1.bf16.msra.mxu0 0
    %687 = vmatprep.subr.bf16.mxu0 0
    %688 = vmatpush1.bf16.msra.mxu0 0
    %689 = vmatprep.subr.bf16.mxu0 0
    %690 = vmatpush1.bf16.msra.mxu0 0
    %691 = vmatprep.subr.bf16.mxu0 0
    %692 = vmatpush1.bf16.msra.mxu0 0
    %693 = vmatprep.subr.bf16.mxu0 0
    %694 = vmatpush1.bf16.msra.mxu0 0
    %695 = vmatprep.subr.bf16.mxu0 0
    %696 = vmatpush1.bf16.msra.mxu0 0
    %697 = vmatprep.subr.bf16.mxu0 0
    %698 = vmatpush1.bf16.msra.mxu0 0
    %699 = vmatprep.subr.bf16.mxu0 0
    %700 = vmatpush1.bf16.msra.mxu0 0
    %701 = vmatprep.subr.bf16.mxu0 0
    %702 = vmatpush1.bf16.msra.mxu0 0
    %703 = vmatprep.subr.bf16.mxu0 0
    %704 = vmatpush1.bf16.msra.mxu0 0
    %705 = vmatprep.subr.bf16.mxu0 0
    %706 = vmatpush1.bf16.msra.mxu0 0
    %707 = vmatprep.subr.bf16.mxu0 0
    %708 = vmatpush1.bf16.msra.mxu0 0
    %709 = vmatprep.subr.bf16.mxu0 0
    %710 = vmatpush1.bf16.msra.mxu0 0
    %711 = vmatprep.mubr.bf16.mxu0 0
    %712 = vmatmul.mubr.bf16.gmra.mrb[0].mxu0 %v677
    %v713 = vpop.f32.mrb[0].mxu0
    %v714 = vadd.f32 0.0, %v713
    %v715 = vpop.f32.mrb[0].mxu0
    %v716 = vpop.f32.mrb[0].mxu0
    %v717 = vpop.f32.mrb[0].mxu0
    %718 = vdwg.mxu0
    %v720 = vrot.slane %v714, 4
    %v722 = vadd.f32 %v516, %v720
    %v723 = vxor.u32 %v722, 2147483648
    %v724 = vmul.f32 %v723, 1.442695
    %v725 = vpow.pop %v724
    %v726 = vadd.f32 %v725, 1.0
    %v727 = vrcp.pop %v726
    %v728 = vmul.f32 1.0, %v727
    %v729 = vtanh.pop %v722
    %v731 = vrot.slane %v664, 6
    %v733 = vmul.f32 %v728, %v731
    %735 = vrot.lane.b32.xlu0 %v729, 64
    %v736 = vpop.permute.xlu0 %735
    %v738 = vmul.f32 %v728, %v736
    %740 = vrot.lane.b32.xlu0 %v738, 32
    %v741 = vpop.permute.xlu0 %740
    %v743 = vadd.f32 %v733, %v741
    %v744 = vtanh.pop %v743
    %746 = vrot.lane.b32.xlu0 %v744, 64
    %v747 = vpop.permute.xlu0 %746
    %v749 = vmul.f32 %v728, %v747
    %v750 = vpack.c.bf16 %v749, %v749
    %v752 = vrot.slane %v750, 2
    %753 = vrot.lane.b32.xlu0 %v752, 32
    %v754 = vpop.permute.xlu0 %753
    %v756 = vsel %vm211, %v754, 0
    %758 = vmatprep.subr.bf16.mxu0 0
    %759 = vmatpush1.bf16.msra.mxu0 %v207
    %760 = vmatprep.subr.bf16.mxu0 0
    %761 = vmatpush1.bf16.msra.mxu0 %v208
    %762 = vmatprep.subr.bf16.mxu0 0
    %763 = vmatpush1.bf16.msra.mxu0 0
    %764 = vmatprep.subr.bf16.mxu0 0
    %765 = vmatpush1.bf16.msra.mxu0 0
    %766 = vmatprep.subr.bf16.mxu0 0
    %767 = vmatpush1.bf16.msra.mxu0 0
    %768 = vmatprep.subr.bf16.mxu0 0
    %769 = vmatpush1.bf16.msra.mxu0 0
    %770 = vmatprep.subr.bf16.mxu0 0
    %771 = vmatpush1.bf16.msra.mxu0 0
    %772 = vmatprep.subr.bf16.mxu0 0
    %773 = vmatpush1.bf16.msra.mxu0 0
    %774 = vmatprep.subr.bf16.mxu0 0
    %775 = vmatpush1.bf16.msra.mxu0 0
    %776 = vmatprep.subr.bf16.mxu0 0
    %777 = vmatpush1.bf16.msra.mxu0 0
    %778 = vmatprep.subr.bf16.mxu0 0
    %779 = vmatpush1.bf16.msra.mxu0 0
    %780 = vmatprep.subr.bf16.mxu0 0
    %781 = vmatpush1.bf16.msra.mxu0 0
    %782 = vmatprep.subr.bf16.mxu0 0
    %783 = vmatpush1.bf16.msra.mxu0 0
    %784 = vmatprep.subr.bf16.mxu0 0
    %785 = vmatpush1.bf16.msra.mxu0 0
    %786 = vmatprep.subr.bf16.mxu0 0
    %787 = vmatpush1.bf16.msra.mxu0 0
    %788 = vmatprep.subr.bf16.mxu0 0
    %789 = vmatpush1.bf16.msra.mxu0 0
    %790 = vmatprep.mubr.bf16.mxu0 0
    %791 = vmatmul.mubr.bf16.gmra.mrb[0].mxu0 %v756
    %v792 = vpop.f32.mrb[0].mxu0
    %v793 = vadd.f32 0.0, %v792
    %v794 = vpop.f32.mrb[0].mxu0
    %v795 = vpop.f32.mrb[0].mxu0
    %v796 = vpop.f32.mrb[0].mxu0
    %797 = vdwg.mxu0
    %v799 = vrot.slane %v793, 2
    %v801 = vadd.f32 %v516, %v799
    %v802 = vxor.u32 %v801, 2147483648
    %v803 = vmul.f32 %v802, 1.442695
    %v804 = vpow.pop %v803
    %v805 = vadd.f32 %v804, 1.0
    %v806 = vrcp.pop %v805
    %v807 = vmul.f32 1.0, %v806
    %v808 = vtanh.pop %v801
    %v810 = vrot.slane %v743, 6
    %v812 = vmul.f32 %v807, %v810
    %814 = vrot.lane.b32.xlu0 %v808, 64
    %v815 = vpop.permute.xlu0 %814
    %v817 = vmul.f32 %v807, %v815
    %819 = vrot.lane.b32.xlu0 %v817, 32
    %v820 = vpop.permute.xlu0 %819
    %v822 = vadd.f32 %v812, %v820
    %v823 = vtanh.pop %v822
    %825 = vrot.lane.b32.xlu0 %v823, 64
    %v826 = vpop.permute.xlu0 %825
    %v828 = vmul.f32 %v807, %v826
    %v829 = vld [vmem:[%s5] sm:$0x1]
    %v831 = vlaneseq
    %v832 = vshrl.u32 %v831, 7
    %v833 = vsub.s32 0, %v832
    %v834 = vrot.slane %v829, %v833
    %v836 = vadd.f32 %v185, %v834
    %v837 = vxor.u32 %v836, 2147483648
    %v838 = vmul.f32 %v837, 1.442695
    %v839 = vpow.pop %v838
    %v840 = vadd.f32 %v839, 1.0
    %v841 = vrcp.pop %v840
    %v842 = vmul.f32 1.0, %v841
    %v843 = vtanh.pop %v836
    %845 = vrot.lane.b32.xlu0 %v843, 64
    %v846 = vpop.permute.xlu0 %845
    %v848 = vmul.f32 %v842, %v846
    %v849 = vtanh.pop %v848
    %851 = vrot.lane.b32.xlu0 %v849, 96
    %v852 = vpop.permute.xlu0 %851
    %v854 = vmul.f32 %v842, %v852
    %v855 = vpack.c.bf16 %v828, %v828
    %v856 = vld [vmem:[%s6] sm:$0xf]
    %v857 = vld [vmem:[%s6 + $0x4] sm:$0xf]
    %v858 = vld [vmem:[%s6 + $0x8] sm:$0xf]
    %v859 = vld [vmem:[%s6 + $0xc] sm:$0xf]
    %v860 = vpack.c.bf16 %v854, %v854
    %v861 = vld [vmem:[%s7] sm:$0xf]
    %v862 = vld [vmem:[%s7 + $0x4] sm:$0xf]
    %v863 = vld [vmem:[%s7 + $0x8] sm:$0xf]
    %v864 = vld [vmem:[%s7 + $0xc] sm:$0xf]
    %v866 = vrot.slane %v860, 3
    %867 = vrot.lane.b32.xlu0 %v866, 32
    %v868 = vpop.permute.xlu0 %867
    %v873 = vunpack.c.l.b16 %v861
    %v874 = vunpack.c.l.b16 %v862
    %v875 = vunpack.c.l.b16 %v863
    %v876 = vunpack.c.l.b16 %v864
    %v877 = vpack.c.b16 %v874, %v873
    %v878 = vpack.c.b16 %v876, %v875
    %v882 = vsel %vm211, %v868, 0
    %884 = vmatprep.subr.bf16.mxu0 0
    %885 = vmatpush1.bf16.msra.mxu0 %v877
    %886 = vmatprep.subr.bf16.mxu0 0
    %887 = vmatpush1.bf16.msra.mxu0 %v878
    %888 = vmatprep.subr.bf16.mxu0 0
    %889 = vmatpush1.bf16.msra.mxu0 0
    %890 = vmatprep.subr.bf16.mxu0 0
    %891 = vmatpush1.bf16.msra.mxu0 0
    %892 = vmatprep.subr.bf16.mxu0 0
    %893 = vmatpush1.bf16.msra.mxu0 0
    %894 = vmatprep.subr.bf16.mxu0 0
    %895 = vmatpush1.bf16.msra.mxu0 0
    %896 = vmatprep.subr.bf16.mxu0 0
    %897 = vmatpush1.bf16.msra.mxu0 0
    %898 = vmatprep.subr.bf16.mxu0 0
    %899 = vmatpush1.bf16.msra.mxu0 0
    %900 = vmatprep.subr.bf16.mxu0 0
    %901 = vmatpush1.bf16.msra.mxu0 0
    %902 = vmatprep.subr.bf16.mxu0 0
    %903 = vmatpush1.bf16.msra.mxu0 0
    %904 = vmatprep.subr.bf16.mxu0 0
    %905 = vmatpush1.bf16.msra.mxu0 0
    %906 = vmatprep.subr.bf16.mxu0 0
    %907 = vmatpush1.bf16.msra.mxu0 0
    %908 = vmatprep.subr.bf16.mxu0 0
    %909 = vmatpush1.bf16.msra.mxu0 0
    %910 = vmatprep.subr.bf16.mxu0 0
    %911 = vmatpush1.bf16.msra.mxu0 0
    %912 = vmatprep.subr.bf16.mxu0 0
    %913 = vmatpush1.bf16.msra.mxu0 0
    %914 = vmatprep.subr.bf16.mxu0 0
    %915 = vmatpush1.bf16.msra.mxu0 0
    %916 = vmatprep.mubr.bf16.mxu0 0
    %917 = vmatmul.mubr.bf16.gmra.mrb[0].mxu0 %v882
    %v918 = vpop.f32.mrb[0].mxu0
    %v919 = vadd.f32 0.0, %v918
    %v920 = vpop.f32.mrb[0].mxu0
    %v921 = vpop.f32.mrb[0].mxu0
    %v922 = vpop.f32.mrb[0].mxu0
    %923 = vdwg.mxu0
    %v925 = vrot.slane %v855, 3
    %926 = vrot.lane.b32.xlu0 %v925, 32
    %v927 = vpop.permute.xlu0 %926
    %v932 = vunpack.c.l.b16 %v856
    %v933 = vunpack.c.l.b16 %v857
    %v934 = vunpack.c.l.b16 %v858
    %v935 = vunpack.c.l.b16 %v859
    %v936 = vpack.c.b16 %v933, %v932
    %v937 = vpack.c.b16 %v935, %v934
    %v941 = vsel %vm211, %v927, 0
    %943 = vmatprep.subr.bf16.mxu0 0
    %944 = vmatpush1.bf16.msra.mxu0 %v936
    %945 = vmatprep.subr.bf16.mxu0 0
    %946 = vmatpush1.bf16.msra.mxu0 %v937
    %947 = vmatprep.subr.bf16.mxu0 0
    %948 = vmatpush1.bf16.msra.mxu0 0
    %949 = vmatprep.subr.bf16.mxu0 0
    %950 = vmatpush1.bf16.msra.mxu0 0
    %951 = vmatprep.subr.bf16.mxu0 0
    %952 = vmatpush1.bf16.msra.mxu0 0
    %953 = vmatprep.subr.bf16.mxu0 0
    %954 = vmatpush1.bf16.msra.mxu0 0
    %955 = vmatprep.subr.bf16.mxu0 0
    %956 = vmatpush1.bf16.msra.mxu0 0
    %957 = vmatprep.subr.bf16.mxu0 0
    %958 = vmatpush1.bf16.msra.mxu0 0
    %959 = vmatprep.subr.bf16.mxu0 0
    %960 = vmatpush1.bf16.msra.mxu0 0
    %961 = vmatprep.subr.bf16.mxu0 0
    %962 = vmatpush1.bf16.msra.mxu0 0
    %963 = vmatprep.subr.bf16.mxu0 0
    %964 = vmatpush1.bf16.msra.mxu0 0
    %965 = vmatprep.subr.bf16.mxu0 0
    %966 = vmatpush1.bf16.msra.mxu0 0
    %967 = vmatprep.subr.bf16.mxu0 0
    %968 = vmatpush1.bf16.msra.mxu0 0
    %969 = vmatprep.subr.bf16.mxu0 0
    %970 = vmatpush1.bf16.msra.mxu0 0
    %971 = vmatprep.subr.bf16.mxu0 0
    %972 = vmatpush1.bf16.msra.mxu0 0
    %973 = vmatprep.subr.bf16.mxu0 0
    %974 = vmatpush1.bf16.msra.mxu0 0
    %975 = vmatprep.mubr.bf16.mxu0 0
    %976 = vmatmul.mubr.bf16.gmra.mrb[0].mxu0 %v941
    %v977 = vpop.f32.mrb[0].mxu0
    %v978 = vadd.f32 %v919, %v977
    %v979 = vpop.f32.mrb[0].mxu0
    %v980 = vpop.f32.mrb[0].mxu0
    %v981 = vpop.f32.mrb[0].mxu0
    %982 = vdwg.mxu0
    %v983 = vld [vmem:[%s8] sm:$0x1]
    %v985 = vlaneseq
    %v986 = vshrl.u32 %v985, 7
    %v987 = vsub.s32 0, %v986
    %v988 = vrot.slane %v983, %v987
    %v990 = vadd.f32 %v978, %v988
    %vm991 = vcmask 33792
    %992 = vst.msk [vmem:[#allocation2] sm:$0x3] %vm991, %v990
    // Predicated region
    $region38: #{my_classifier_forward.1} parent=1 // pred_check
      _
    $region39: #{my_classifier_forward.1} parent=1 // pred_check_branch
      %994 = sbr.rel (0) target = $region41
    $region40: #{my_classifier_forward.1} parent=1 // pred_region
      %s996 = ssub.s32 32, 32
      %997 = vsyncadd [#allocation3], %s996
      %s999 = sshll.u32 [#allocation2], 4
      %s1000 = int_to_ptr.vmem [resolvable:$true] %s999
      %1002 = dma.vmem_to_hbm [thread:$0]  %s1000, 32, %s9, [#allocation3]
    $region41: #{my_classifier_forward.1} parent=1 // pred_fallthru
      _
    // Predicated region
    $region42: #{my_classifier_forward.1} parent=1 // pred_check
      _
    $region43: #{my_classifier_forward.1} parent=1 // pred_check_branch
      %1004 = sbr.rel (0) target = $region45
    $region44: #{my_classifier_forward.1} parent=1 // pred_region
      %1005 = dma.done [#allocation3], 32
    $region45: #{my_classifier_forward.1} parent=1 // pred_fallthru
      _
    %1006 = vsyncpa [#allocation3], 1

</llo_original>
